<compile_context>
chip_gen: v7x
topology: tpu7x:2x2x1
jax: 0.10.0
libtpu: 0.0.40
codegen_flags: <defaults>
</compile_context>

<pallas_src>
import functools

import jax
import jax.numpy as jnp
from jax.experimental import pallas as pl
from jax.experimental.pallas import tpu as pltpu


def _round_up(x, m):
    return ((x + m - 1) // m) * m


def _vmem_capacity_bytes():
    try:
        return int(pltpu.get_tpu_info().vmem_capacity_bytes)
    except Exception:
        return 64 << 20            # conservative fallback (v7x per-TC VMEM)


def _tensorcores_per_chip():
    try:
        kind = jax.devices()[0].device_kind.lower()
    except Exception:
        return 1
    return 2 if any(t in kind for t in ("v4", "v5p", "v7")) else 1


# ---------------------------------------------------------------------------
# Kernel: fused Linear+ReLU chain + softmax on one row tile.
# ---------------------------------------------------------------------------
def _fused_mlp_kernel(x_ref, *refs, n_layers, approx_recip):
    o_ref = refs[-1]
    params = refs[:-1]                      # w0, b0, w1, b1, ...

    y = x_ref[...]                          # (tm, D0), bf16 or f32
    for li in range(n_layers):
        w = params[2 * li][...]             # (K_i, N_i) — resident in VMEM
        b = params[2 * li + 1][...]         # (1, N_i)   — f32
        y = jnp.dot(y.astype(w.dtype), w,   # MXU, f32 accumulation
                    preferred_element_type=jnp.float32)
        y = jnp.maximum(y + b, 0.0)         # bias + ReLU in f32

    # Softmax over the (unpadded) num_tags columns.
    m = jnp.max(y, axis=-1, keepdims=True)
    e = jnp.exp(y - m)
    s = jnp.sum(e, axis=-1, keepdims=True)
    if approx_recip:
        o_ref[...] = (e * pl.reciprocal(s, approx=True)).astype(o_ref.dtype)
    else:
        o_ref[...] = (e / s).astype(o_ref.dtype)


# ---------------------------------------------------------------------------
# Wrapper
# ---------------------------------------------------------------------------
def finetune_layer_forward(inputs, weights, biases, *, use_bf16=True,
                           tm_cap=8192):
    """inputs: (B, S, D0); weights[i]: (D_i, D_{i+1}); biases[i]: (1, D_{i+1})."""
    B, S, D0 = inputs.shape
    n_layers = len(weights)
    num_tags = int(weights[-1].shape[1])
    M = B * S

    row_align = 16 if use_bf16 else 8       # bf16 packs 2 rows per sublane
    x_bytes = 2 if use_bf16 else 4
    x = inputs.reshape(M, D0).astype(jnp.bfloat16 if use_bf16 else jnp.float32)

    ws = [jnp.asarray(w, jnp.bfloat16 if use_bf16 else jnp.float32)
          for w in weights]
    bs = [jnp.asarray(b, jnp.float32) for b in biases]
    n_dims = [int(w.shape[1]) for w in ws]
    param_bytes = (sum(int(w.size) * w.dtype.itemsize for w in ws)
                   + sum(int(b.size) * b.dtype.itemsize for b in bs))

    vmem_cap = _vmem_capacity_bytes()
    num_tc = _tensorcores_per_chip()

    # --- row-tile selection: target ~1.5 MiB of HBM traffic per grid step ---
    per_row_hbm = D0 * x_bytes + num_tags * 4           # in read + out write
    per_row_vmem = 2 * per_row_hbm + 4 * (sum(n_dims) + max(n_dims))
    tile_budget = max(4 << 20, vmem_cap - param_bytes - (20 << 20))
    tm_target = _round_up(pl.cdiv((3 << 20) // 2, per_row_hbm), row_align)
    tm_vmem = max(row_align, (tile_budget // per_row_vmem)
                  // row_align * row_align)
    tm = max(row_align, min(_round_up(M, row_align), tm_vmem,
                            max(tm_target, 256), tm_cap))

    # Dual-TC chips: make the grid-step count even so both TensorCores get
    # equal work (only worth it when M is big enough to split).
    if num_tc >= 2 and M >= 1024:
        steps = pl.cdiv(M, tm)
        if steps % 2 == 1:
            tm = max(row_align, _round_up(pl.cdiv(M, steps + 1), row_align))

    M_pad = _round_up(M, tm)
    if M_pad != M:
        x = jnp.pad(x, ((0, M_pad - M), (0, 0)))

    # --- VMEM limit: resident params + tiles + intermediates + headroom -----
    need = param_bytes + tm * per_row_vmem + (6 << 20)
    allow = max(24 << 20, vmem_cap - (16 << 20))
    vmem_limit = int(min(max(need, 16 << 20), allow))

    flat_params = []
    for w, b in zip(ws, bs):
        flat_params += [w, b]

    flops = 2 * M_pad * sum(int(w.shape[0]) * int(w.shape[1]) for w in ws)
    bytes_accessed = (M_pad * D0 * x_bytes + param_bytes
                      + M_pad * num_tags * 4)
    cost = pl.CostEstimate(flops=flops,
                           transcendentals=M_pad * (num_tags + 1),
                           bytes_accessed=bytes_accessed)

    kernel = functools.partial(_fused_mlp_kernel, n_layers=n_layers,
                               approx_recip=use_bf16)

    def run(single_buffer_params):
        in_specs = [pl.BlockSpec((tm, D0), lambda i: (i, 0))]
        for p in flat_params:
            if single_buffer_params:
                # Constant index_map -> no benefit from double-buffering;
                # halve the resident-parameter VMEM footprint.
                in_specs.append(pl.BlockSpec(p.shape, lambda i: (0, 0),
                                             pipeline_mode=pl.Buffered(1)))
            else:
                in_specs.append(pl.BlockSpec(p.shape, lambda i: (0, 0)))
        out = pl.pallas_call(
            kernel,
            out_shape=jax.ShapeDtypeStruct((M_pad, num_tags), jnp.float32),
            grid=(M_pad // tm,),
            in_specs=in_specs,
            out_specs=pl.BlockSpec((tm, num_tags), lambda i: (i, 0)),
            compiler_params=pltpu.CompilerParams(
                dimension_semantics=("parallel",),
                vmem_limit_bytes=vmem_limit),
            cost_estimate=cost,
        )(x, *flat_params)
        return jax.block_until_ready(out)

    try:
        out = run(True)
    except Exception:
        out = run(False)     # fall back if Buffered(1) is rejected

    return out[:M].reshape(B, S, num_tags)


# ---------------------------------------------------------------------------
# Deterministic parameter init (xavier_uniform weights, zero biases — matches
# the module's init_weights() convention).
# ---------------------------------------------------------------------------
def make_params(layer_hidden_dims, key):
    weights, biases = [], []
    for i in range(len(layer_hidden_dims) - 1):
        fan_in, fan_out = layer_hidden_dims[i], layer_hidden_dims[i + 1]
        key, sub = jax.random.split(key)
        a = jnp.sqrt(6.0 / (fan_in + fan_out))
        w = jax.random.uniform(sub, (fan_in, fan_out), jnp.float32,
                               minval=-a, maxval=a)
        b = jnp.zeros((1, fan_out), jnp.float32)
        weights.append(w)
        biases.append(b)
    return weights, biases


# ---------------------------------------------------------------------------
# Reference (plain JAX) for sanity checking.
# ---------------------------------------------------------------------------
def reference_forward(inputs, weights, biases):
    x = inputs
    for w, b in zip(weights, biases):
        x = jnp.maximum(
            jnp.einsum("bsd,de->bse", x, w,
                       precision=jax.lax.Precision.HIGHEST) + b[0], 0.0)
    return jax.nn.softmax(x, axis=2)


if __name__ == "__main__":
    # Small shapes: batch=2, seq=8, bert_hidden_dim=32, num_tags=8.
    layer_hidden_dims = [32, 16, 8]   # [bert_hidden_dim, ..., num_tags]
    bert_hidden_dim = 32
    num_tags = 8
    assert layer_hidden_dims[0] == bert_hidden_dim
    assert layer_hidden_dims[-1] == num_tags

    key = jax.random.PRNGKey(0)
    key, k_in = jax.random.split(key)
    B, S = 2, 8
    inputs = jax.random.normal(k_in, (B, S, bert_hidden_dim), jnp.float32)

    weights, biases = make_params(layer_hidden_dims, key)
    ref = reference_forward(inputs, weights, biases)

    # f32 path (exact division): tight check against the f32 reference.
    out_f32 = finetune_layer_forward(inputs, weights, biases, use_bf16=False)
    out_f32 = jax.block_until_ready(out_f32)
    assert out_f32.shape == (B, S, num_tags)
    assert jnp.allclose(out_f32, ref, atol=1e-4, rtol=1e-4)
    assert jnp.allclose(jnp.sum(out_f32, axis=2), 1.0, atol=1e-5)

    # bf16-MXU fast path (default): bf16 activations/weights + approx
    # reciprocal -> loose checks vs f32 reference.
    out = finetune_layer_forward(inputs, weights, biases, use_bf16=True)
    out = jax.block_until_ready(out)
    assert out.shape == (B, S, num_tags)
    assert jnp.allclose(out, ref, atol=2e-2, rtol=2e-2)
    assert jnp.allclose(jnp.sum(out, axis=2), 1.0, atol=1e-2)

    print("KERNEL_OK")
</pallas_src>

<mosaic_0001>
module attributes {stable_mosaic.version = 11 : i64} {
  func.func @_fused_mlp_kernel(%arg0: i32, %arg1: memref<16x32xf32, #tpu.memory_space<vmem>>, %arg2: memref<32x16xf32, #tpu.memory_space<vmem>>, %arg3: memref<1x16xf32, #tpu.memory_space<vmem>>, %arg4: memref<16x8xf32, #tpu.memory_space<vmem>>, %arg5: memref<1x8xf32, #tpu.memory_space<vmem>>, %arg6: memref<16x8xf32, #tpu.memory_space<vmem>>) attributes {dimension_semantics = [#tpu.dimension_semantics<parallel>], iteration_bounds = array<i64: 1>, scalar_prefetch = 0 : i64, scratch_operands = 0 : i64, tpu.core_type = #tpu.core_type<tc>, window_params = [{transform_indices = @transform_0, window_bounds = array<i64: 16, 32>}, {pipeline_mode = #tpu.pipeline_mode<synchronous>, transform_indices = @transform_1, window_bounds = array<i64: 32, 16>}, {pipeline_mode = #tpu.pipeline_mode<synchronous>, transform_indices = @transform_2, window_bounds = array<i64: 1, 16>}, {pipeline_mode = #tpu.pipeline_mode<synchronous>, transform_indices = @transform_3, window_bounds = array<i64: 16, 8>}, {pipeline_mode = #tpu.pipeline_mode<synchronous>, transform_indices = @transform_4, window_bounds = array<i64: 1, 8>}, {transform_indices = @transform_5, window_bounds = array<i64: 16, 8>}]} {
    %c0 = arith.constant 0 : index
    %c0_0 = arith.constant 0 : index
    %0 = vector.load %arg1[%c0, %c0_0] : memref<16x32xf32, #tpu.memory_space<vmem>>, vector<16x32xf32>
    %c0_1 = arith.constant 0 : index
    %c0_2 = arith.constant 0 : index
    %1 = vector.load %arg2[%c0_1, %c0_2] : memref<32x16xf32, #tpu.memory_space<vmem>>, vector<32x16xf32>
    %c0_3 = arith.constant 0 : index
    %c0_4 = arith.constant 0 : index
    %2 = vector.load %arg3[%c0_3, %c0_4] : memref<1x16xf32, #tpu.memory_space<vmem>>, vector<1x16xf32>
    %cst = arith.constant dense<0.000000e+00> : vector<16x16xf32>
    %3 = tpu.matmul %0, %1, %cst {dimension_numbers = #tpu.dot_dimension_numbers<[1], [0], [0], [1], [0, 0, 1, 1], [], []>} : vector<16x32xf32>, vector<32x16xf32>, vector<16x16xf32> -> vector<16x16xf32>
    %4 = vector.broadcast %2 : vector<1x16xf32> to vector<16x16xf32>
    %5 = arith.addf %3, %4 : vector<16x16xf32>
    %cst_5 = arith.constant 0.000000e+00 : f32
    %6 = vector.broadcast %cst_5 : f32 to vector<16x16xf32>
    %7 = arith.maximumf %5, %6 : vector<16x16xf32>
    %c0_6 = arith.constant 0 : index
    %c0_7 = arith.constant 0 : index
    %8 = vector.load %arg4[%c0_6, %c0_7] : memref<16x8xf32, #tpu.memory_space<vmem>>, vector<16x8xf32>
    %c0_8 = arith.constant 0 : index
    %c0_9 = arith.constant 0 : index
    %9 = vector.load %arg5[%c0_8, %c0_9] : memref<1x8xf32, #tpu.memory_space<vmem>>, vector<1x8xf32>
    %cst_10 = arith.constant dense<0.000000e+00> : vector<16x8xf32>
    %10 = tpu.matmul %7, %8, %cst_10 {dimension_numbers = #tpu.dot_dimension_numbers<[1], [0], [0], [1], [0, 0, 1, 1], [], []>} : vector<16x16xf32>, vector<16x8xf32>, vector<16x8xf32> -> vector<16x8xf32>
    %11 = vector.broadcast %9 : vector<1x8xf32> to vector<16x8xf32>
    %12 = arith.addf %10, %11 : vector<16x8xf32>
    %cst_11 = arith.constant 0.000000e+00 : f32
    %13 = vector.broadcast %cst_11 : f32 to vector<16x8xf32>
    %14 = arith.maximumf %12, %13 : vector<16x8xf32>
    %cst_12 = arith.constant dense<0xFF800000> : vector<16xf32>
    %15 = vector.multi_reduction <maximumf>, %14, %cst_12 [1] : vector<16x8xf32> to vector<16xf32>
    %16 = vector.shape_cast %15 : vector<16xf32> to vector<16x1xf32>
    %17 = vector.broadcast %16 : vector<16x1xf32> to vector<16x8xf32>
    %18 = arith.subf %14, %17 : vector<16x8xf32>
    %19 = math.exp %18 : vector<16x8xf32>
    %cst_13 = arith.constant dense<0.000000e+00> : vector<16xf32>
    %20 = vector.multi_reduction <add>, %19, %cst_13 [1] : vector<16x8xf32> to vector<16xf32>
    %21 = vector.shape_cast %20 : vector<16xf32> to vector<16x1xf32>
    %22 = vector.broadcast %21 : vector<16x1xf32> to vector<16x8xf32>
    %23 = arith.divf %19, %22 : vector<16x8xf32>
    %c0_14 = arith.constant 0 : index
    %c0_15 = arith.constant 0 : index
    %24 = vector.load %arg6[%c0_14, %c0_15] : memref<16x8xf32, #tpu.memory_space<vmem>>, vector<16x8xf32>
    tpu.vector_store %arg6[%c0_14, %c0_15], %23 {strides = array<i32>} : memref<16x8xf32, #tpu.memory_space<vmem>>, vector<16x8xf32>,
    return
  }
  func.func @transform_0(%arg0: i32) -> (i32, i32) {
    %c0_i32 = arith.constant 0 : i32
    %c0_i32_0 = arith.constant 0 : i32
    return %arg0, %c0_i32 : i32, i32
  }
  func.func @transform_1(%arg0: i32) -> (i32, i32) {
    %c0_i32 = arith.constant 0 : i32
    %c0_i32_0 = arith.constant 0 : i32
    %c0_i32_1 = arith.constant 0 : i32
    return %c0_i32, %c0_i32_0 : i32, i32
  }
  func.func @transform_2(%arg0: i32) -> (i32, i32) {
    %c0_i32 = arith.constant 0 : i32
    %c0_i32_0 = arith.constant 0 : i32
    %c0_i32_1 = arith.constant 0 : i32
    return %c0_i32, %c0_i32_0 : i32, i32
  }
  func.func @transform_3(%arg0: i32) -> (i32, i32) {
    %c0_i32 = arith.constant 0 : i32
    %c0_i32_0 = arith.constant 0 : i32
    %c0_i32_1 = arith.constant 0 : i32
    return %c0_i32, %c0_i32_0 : i32, i32
  }
  func.func @transform_4(%arg0: i32) -> (i32, i32) {
    %c0_i32 = arith.constant 0 : i32
    %c0_i32_0 = arith.constant 0 : i32
    %c0_i32_1 = arith.constant 0 : i32
    return %c0_i32, %c0_i32_0 : i32, i32
  }
  func.func @transform_5(%arg0: i32) -> (i32, i32) {
    %c0_i32 = arith.constant 0 : i32
    %c0_i32_0 = arith.constant 0 : i32
    return %arg0, %c0_i32 : i32, i32
  }
}

module attributes {stable_mosaic.version = 11 : i64} {
  func.func @_fused_mlp_kernel(%arg0: i32, %arg1: memref<16x32xf32, #tpu.memory_space<vmem>>, %arg2: memref<32x16xf32, #tpu.memory_space<vmem>>, %arg3: memref<1x16xf32, #tpu.memory_space<vmem>>, %arg4: memref<16x8xf32, #tpu.memory_space<vmem>>, %arg5: memref<1x8xf32, #tpu.memory_space<vmem>>, %arg6: memref<16x8xf32, #tpu.memory_space<vmem>>) attributes {dimension_semantics = [#tpu.dimension_semantics<parallel>], iteration_bounds = array<i64: 1>, scalar_prefetch = 0 : i64, scratch_operands = 0 : i64, tpu.core_type = #tpu.core_type<tc>, window_params = [{transform_indices = @transform_0, window_bounds = array<i64: 16, 32>}, {pipeline_mode = #tpu.pipeline_mode<synchronous>, transform_indices = @transform_1, window_bounds = array<i64: 32, 16>}, {pipeline_mode = #tpu.pipeline_mode<synchronous>, transform_indices = @transform_2, window_bounds = array<i64: 1, 16>}, {pipeline_mode = #tpu.pipeline_mode<synchronous>, transform_indices = @transform_3, window_bounds = array<i64: 16, 8>}, {pipeline_mode = #tpu.pipeline_mode<synchronous>, transform_indices = @transform_4, window_bounds = array<i64: 1, 8>}, {transform_indices = @transform_5, window_bounds = array<i64: 16, 8>}]} {
    %c0 = arith.constant 0 : index
    %c0_0 = arith.constant 0 : index
    %0 = vector.load %arg1[%c0, %c0_0] : memref<16x32xf32, #tpu.memory_space<vmem>>, vector<16x32xf32>
    %c0_1 = arith.constant 0 : index
    %c0_2 = arith.constant 0 : index
    %1 = vector.load %arg2[%c0_1, %c0_2] : memref<32x16xf32, #tpu.memory_space<vmem>>, vector<32x16xf32>
    %c0_3 = arith.constant 0 : index
    %c0_4 = arith.constant 0 : index
    %2 = vector.load %arg3[%c0_3, %c0_4] : memref<1x16xf32, #tpu.memory_space<vmem>>, vector<1x16xf32>
    %cst = arith.constant dense<0.000000e+00> : vector<16x16xf32>
    %3 = tpu.matmul %0, %1, %cst {dimension_numbers = #tpu.dot_dimension_numbers<[1], [0], [0], [1], [0, 0, 1, 1], [], []>} : vector<16x32xf32>, vector<32x16xf32>, vector<16x16xf32> -> vector<16x16xf32>
    %4 = vector.broadcast %2 : vector<1x16xf32> to vector<16x16xf32>
    %5 = arith.addf %3, %4 : vector<16x16xf32>
    %cst_5 = arith.constant 0.000000e+00 : f32
    %6 = vector.broadcast %cst_5 : f32 to vector<16x16xf32>
    %7 = arith.maximumf %5, %6 : vector<16x16xf32>
    %c0_6 = arith.constant 0 : index
    %c0_7 = arith.constant 0 : index
    %8 = vector.load %arg4[%c0_6, %c0_7] : memref<16x8xf32, #tpu.memory_space<vmem>>, vector<16x8xf32>
    %c0_8 = arith.constant 0 : index
    %c0_9 = arith.constant 0 : index
    %9 = vector.load %arg5[%c0_8, %c0_9] : memref<1x8xf32, #tpu.memory_space<vmem>>, vector<1x8xf32>
    %cst_10 = arith.constant dense<0.000000e+00> : vector<16x8xf32>
    %10 = tpu.matmul %7, %8, %cst_10 {dimension_numbers = #tpu.dot_dimension_numbers<[1], [0], [0], [1], [0, 0, 1, 1], [], []>} : vector<16x16xf32>, vector<16x8xf32>, vector<16x8xf32> -> vector<16x8xf32>
    %11 = vector.broadcast %9 : vector<1x8xf32> to vector<16x8xf32>
    %12 = arith.addf %10, %11 : vector<16x8xf32>
    %cst_11 = arith.constant 0.000000e+00 : f32
    %13 = vector.broadcast %cst_11 : f32 to vector<16x8xf32>
    %14 = arith.maximumf %12, %13 : vector<16x8xf32>
    %cst_12 = arith.constant dense<0xFF800000> : vector<16xf32>
    %15 = vector.multi_reduction <maximumf>, %14, %cst_12 [1] : vector<16x8xf32> to vector<16xf32>
    %16 = vector.shape_cast %15 : vector<16xf32> to vector<16x1xf32>
    %17 = vector.broadcast %16 : vector<16x1xf32> to vector<16x8xf32>
    %18 = arith.subf %14, %17 : vector<16x8xf32>
    %19 = math.exp %18 : vector<16x8xf32>
    %cst_13 = arith.constant dense<0.000000e+00> : vector<16xf32>
    %20 = vector.multi_reduction <add>, %19, %cst_13 [1] : vector<16x8xf32> to vector<16xf32>
    %21 = vector.shape_cast %20 : vector<16xf32> to vector<16x1xf32>
    %22 = vector.broadcast %21 : vector<16x1xf32> to vector<16x8xf32>
    %23 = arith.divf %19, %22 : vector<16x8xf32>
    %c0_14 = arith.constant 0 : index
    %c0_15 = arith.constant 0 : index
    %24 = vector.load %arg6[%c0_14, %c0_15] : memref<16x8xf32, #tpu.memory_space<vmem>>, vector<16x8xf32>
    tpu.vector_store %arg6[%c0_14, %c0_15], %23 {strides = array<i32>} : memref<16x8xf32, #tpu.memory_space<vmem>>, vector<16x8xf32>,
    return
  }
  func.func @transform_0(%arg0: i32) -> (i32, i32) {
    %c0_i32 = arith.constant 0 : i32
    %c0_i32_0 = arith.constant 0 : i32
    return %arg0, %c0_i32 : i32, i32
  }
  func.func @transform_1(%arg0: i32) -> (i32, i32) {
    %c0_i32 = arith.constant 0 : i32
    %c0_i32_0 = arith.constant 0 : i32
    %c0_i32_1 = arith.constant 0 : i32
    return %c0_i32, %c0_i32_0 : i32, i32
  }
  func.func @transform_2(%arg0: i32) -> (i32, i32) {
    %c0_i32 = arith.constant 0 : i32
    %c0_i32_0 = arith.constant 0 : i32
    %c0_i32_1 = arith.constant 0 : i32
    return %c0_i32, %c0_i32_0 : i32, i32
  }
  func.func @transform_3(%arg0: i32) -> (i32, i32) {
    %c0_i32 = arith.constant 0 : i32
    %c0_i32_0 = arith.constant 0 : i32
    %c0_i32_1 = arith.constant 0 : i32
    return %c0_i32, %c0_i32_0 : i32, i32
  }
  func.func @transform_4(%arg0: i32) -> (i32, i32) {
    %c0_i32 = arith.constant 0 : i32
    %c0_i32_0 = arith.constant 0 : i32
    %c0_i32_1 = arith.constant 0 : i32
    return %c0_i32, %c0_i32_0 : i32, i32
  }
  func.func @transform_5(%arg0: i32) -> (i32, i32) {
    %c0_i32 = arith.constant 0 : i32
    %c0_i32_0 = arith.constant 0 : i32
    return %arg0, %c0_i32 : i32, i32
  }
}

</mosaic_0001>

<llo_original>
// kernel: tpu_custom_call.1
$region0: #{tpu_custom_call.1}
  #allocation0 [shape = 'u32[]', space=smem, size = 0x4, offset = 0x4, fixed_abs, tag = 'smem constant byte address 0x4 - core index']
  #allocation1 [shape = 'u32[144,128]{1,0:T(1,128)}', space=vmem, size = 0x12000, scoped, tag = 'internal scratch']
  %s0 = inlined_call_operand.vmem [shape: f32[16,32], index: 0, kind: input, shape index: {}]
  %s1 = inlined_call_operand.vmem [shape: f32[32,16], index: 1, kind: input, shape index: {}]
  %s2 = inlined_call_operand.vmem [shape: f32[1,16], index: 2, kind: input, shape index: {}]
  %s3 = inlined_call_operand.vmem [shape: f32[16,8], index: 3, kind: input, shape index: {}]
  %s4 = inlined_call_operand.vmem [shape: f32[1,8], index: 4, kind: input, shape index: {}]
  %s5 = inlined_call_operand.vmem [shape: f32[16,8], index: 5, kind: output, shape index: {}]
  %s6 = sld [smem:[#allocation0]]
  $region30: #{tpu_custom_call.1} parent=0
    _
  %s8 = ssub.s32 1, %s6
  %s9 = scalar_select 0, %s8, %s6
  // Predicated region
  $region2: #{tpu_custom_call.1} parent=0 // pred_check
    _
  $region3: #{tpu_custom_call.1} parent=0 // pred_check_branch
    %11 = sbr.rel (0) target = $region5
  $region4: #{tpu_custom_call.1} parent=0 // pred_region
    _
  $region5: #{tpu_custom_call.1} parent=0 // pred_fallthru
    _
  // Predicated region
  $region6: #{tpu_custom_call.1} parent=0 // pred_check
    _
  $region7: #{tpu_custom_call.1} parent=0 // pred_check_branch
    %13 = sbr.rel (0) target = $region9
  $region8: #{tpu_custom_call.1} parent=0 // pred_region
    _
  $region9: #{tpu_custom_call.1} parent=0 // pred_fallthru
    _
  // Predicated region
  $region10: #{tpu_custom_call.1} parent=0 // pred_check
    _
  $region11: #{tpu_custom_call.1} parent=0 // pred_check_branch
    %15 = sbr.rel (0) target = $region13
  $region12: #{tpu_custom_call.1} parent=0 // pred_region
    _
  $region13: #{tpu_custom_call.1} parent=0 // pred_fallthru
    _
  // Predicated region
  $region14: #{tpu_custom_call.1} parent=0 // pred_check
    _
  $region15: #{tpu_custom_call.1} parent=0 // pred_check_branch
    %17 = sbr.rel (0) target = $region17
  $region16: #{tpu_custom_call.1} parent=0 // pred_region
    _
  $region17: #{tpu_custom_call.1} parent=0 // pred_fallthru
    _
  // Predicated region
  $region18: #{tpu_custom_call.1} parent=0 // pred_check
    _
  $region19: #{tpu_custom_call.1} parent=0 // pred_check_branch
    %19 = sbr.rel (0) target = $region21
  $region20: #{tpu_custom_call.1} parent=0 // pred_region
    _
  $region21: #{tpu_custom_call.1} parent=0 // pred_fallthru
    _
  %v20 = vld [vmem:[%s0] sm:$0xff]
  %v21 = vld [vmem:[%s0 + $0x8] sm:$0xff]
  %v22 = vld [vmem:[%s1] sm:$0xff]
  %v23 = vld [vmem:[%s1 + $0x8] sm:$0xff]
  %v24 = vld [vmem:[%s1 + $0x10] sm:$0xff]
  %v25 = vld [vmem:[%s1 + $0x18] sm:$0xff]
  %v26 = vld [vmem:[%s2] sm:$0x1]
  %v28 = vlaneseq
  %v29 = vshrl.u32 %v28, 7
  %v30 = vsub.s32 0, %v29
  %v31 = vrot.slane %v26, %v30
  %vm33 = vcmask 261120
  %v35 = vsel %vm33, %v20, 0
  %v38 = vsel %vm33, %v21, 0
  %40 = vmatprep.subr.mxu0 0.0
  %41 = vmatpush1.msra.mxu0 %v22
  %42 = vmatprep.subr.mxu0 0.0
  %43 = vmatpush1.msra.mxu0 %v23
  %44 = vmatprep.subr.mxu0 0.0
  %45 = vmatpush1.msra.mxu0 %v24
  %46 = vmatprep.subr.mxu0 0.0
  %47 = vmatpush1.msra.mxu0 %v25
  %48 = vmatprep.subr.mxu0 0.0
  %49 = vmatpush1.msra.mxu0 0.0
  %50 = vmatprep.subr.mxu0 0.0
  %51 = vmatpush1.msra.mxu0 0.0
  %52 = vmatprep.subr.mxu0 0.0
  %53 = vmatpush1.msra.mxu0 0.0
  %54 = vmatprep.subr.mxu0 0.0
  %55 = vmatpush1.msra.mxu0 0.0
  %56 = vmatprep.subr.mxu0 0.0
  %57 = vmatpush1.msra.mxu0 0.0
  %58 = vmatprep.subr.mxu0 0.0
  %59 = vmatpush1.msra.mxu0 0.0
  %60 = vmatprep.subr.mxu0 0.0
  %61 = vmatpush1.msra.mxu0 0.0
  %62 = vmatprep.subr.mxu0 0.0
  %63 = vmatpush1.msra.mxu0 0.0
  %64 = vmatprep.subr.mxu0 0.0
  %65 = vmatpush1.msra.mxu0 0.0
  %66 = vmatprep.subr.mxu0 0.0
  %67 = vmatpush1.msra.mxu0 0.0
  %68 = vmatprep.subr.mxu0 0.0
  %69 = vmatpush1.msra.mxu0 0.0
  %70 = vmatprep.subr.mxu0 0.0
  %71 = vmatpush1.msra.mxu0 0.0
  %72 = vmatprep.subr.mxu0 0.0
  %73 = vmatpush1.msra.mxu0 0.0
  %74 = vmatprep.subr.mxu0 0.0
  %75 = vmatpush1.msra.mxu0 0.0
  %76 = vmatprep.subr.mxu0 0.0
  %77 = vmatpush1.msra.mxu0 0.0
  %78 = vmatprep.subr.mxu0 0.0
  %79 = vmatpush1.msra.mxu0 0.0
  %80 = vmatprep.subr.mxu0 0.0
  %81 = vmatpush1.msra.mxu0 0.0
  %82 = vmatprep.subr.mxu0 0.0
  %83 = vmatpush1.msra.mxu0 0.0
  %84 = vmatprep.subr.mxu0 0.0
  %85 = vmatpush1.msra.mxu0 0.0
  %86 = vmatprep.subr.mxu0 0.0
  %87 = vmatpush1.msra.mxu0 0.0
  %88 = vmatprep.subr.mxu0 0.0
  %89 = vmatpush1.msra.mxu0 0.0
  %90 = vmatprep.subr.mxu0 0.0
  %91 = vmatpush1.msra.mxu0 0.0
  %92 = vmatprep.subr.mxu0 0.0
  %93 = vmatpush1.msra.mxu0 0.0
  %94 = vmatprep.subr.mxu0 0.0
  %95 = vmatpush1.msra.mxu0 0.0
  %96 = vmatprep.subr.mxu0 0.0
  %97 = vmatpush1.msra.mxu0 0.0
  %98 = vmatprep.subr.mxu0 0.0
  %99 = vmatpush1.msra.mxu0 0.0
  %100 = vmatprep.subr.mxu0 0.0
  %101 = vmatpush1.msra.mxu0 0.0
  %102 = vmatprep.subr.mxu0 0.0
  %103 = vmatpush1.msra.mxu0 0.0
  %104 = vmatprep.mubr.f32.mxu0 0.0
  %105 = vmatmul.mubr.f32.gmra.mrb[0].mxu0 %v35
  %v106 = vpop.f32.mrb[0].mxu0
  %v107 = vadd.f32 %v31, %v106
  %v108 = vpop.f32.mrb[0].mxu0
  %109 = vmatprep.mubr.f32.mxu0 0.0
  %110 = vmatmul.mubr.f32.gmra.mrb[0].mxu0 %v38
  %v111 = vpop.f32.mrb[0].mxu0
  %v112 = vadd.f32 %v31, %v111
  %v113 = vpop.f32.mrb[0].mxu0
  %114 = vdwg.mxu0
  %v115 = vmax.f32 %v107, 0.0
  %v116 = vmax.f32 %v112, 0.0
  %v117 = vld [vmem:[%s3] sm:$0xff]
  %v118 = vld [vmem:[%s3 + $0x8] sm:$0xff]
  %v119 = vld [vmem:[%s4] sm:$0x1]
  %v121 = vlaneseq
  %v122 = vshrl.u32 %v121, 7
  %v123 = vsub.s32 0, %v122
  %v124 = vrot.slane %v119, %v123
  %vm126 = vcmask 130048
  %v128 = vsel %vm126, %v115, 0
  %v131 = vsel %vm126, %v116, 0
  %133 = vmatprep.subr.mxu0 0.0
  %134 = vmatpush1.msra.mxu0 %v117
  %135 = vmatprep.subr.mxu0 0.0
  %136 = vmatpush1.msra.mxu0 %v118
  %137 = vmatprep.subr.mxu0 0.0
  %138 = vmatpush1.msra.mxu0 0.0
  %139 = vmatprep.subr.mxu0 0.0
  %140 = vmatpush1.msra.mxu0 0.0
  %141 = vmatprep.subr.mxu0 0.0
  %142 = vmatpush1.msra.mxu0 0.0
  %143 = vmatprep.subr.mxu0 0.0
  %144 = vmatpush1.msra.mxu0 0.0
  %145 = vmatprep.subr.mxu0 0.0
  %146 = vmatpush1.msra.mxu0 0.0
  %147 = vmatprep.subr.mxu0 0.0
  %148 = vmatpush1.msra.mxu0 0.0
  %149 = vmatprep.subr.mxu0 0.0
  %150 = vmatpush1.msra.mxu0 0.0
  %151 = vmatprep.subr.mxu0 0.0
  %152 = vmatpush1.msra.mxu0 0.0
  %153 = vmatprep.subr.mxu0 0.0
  %154 = vmatpush1.msra.mxu0 0.0
  %155 = vmatprep.subr.mxu0 0.0
  %156 = vmatpush1.msra.mxu0 0.0
  %157 = vmatprep.subr.mxu0 0.0
  %158 = vmatpush1.msra.mxu0 0.0
  %159 = vmatprep.subr.mxu0 0.0
  %160 = vmatpush1.msra.mxu0 0.0
  %161 = vmatprep.subr.mxu0 0.0
  %162 = vmatpush1.msra.mxu0 0.0
  %163 = vmatprep.subr.mxu0 0.0
  %164 = vmatpush1.msra.mxu0 0.0
  %165 = vmatprep.subr.mxu0 0.0
  %166 = vmatpush1.msra.mxu0 0.0
  %167 = vmatprep.subr.mxu0 0.0
  %168 = vmatpush1.msra.mxu0 0.0
  %169 = vmatprep.subr.mxu0 0.0
  %170 = vmatpush1.msra.mxu0 0.0
  %171 = vmatprep.subr.mxu0 0.0
  %172 = vmatpush1.msra.mxu0 0.0
  %173 = vmatprep.subr.mxu0 0.0
  %174 = vmatpush1.msra.mxu0 0.0
  %175 = vmatprep.subr.mxu0 0.0
  %176 = vmatpush1.msra.mxu0 0.0
  %177 = vmatprep.subr.mxu0 0.0
  %178 = vmatpush1.msra.mxu0 0.0
  %179 = vmatprep.subr.mxu0 0.0
  %180 = vmatpush1.msra.mxu0 0.0
  %181 = vmatprep.subr.mxu0 0.0
  %182 = vmatpush1.msra.mxu0 0.0
  %183 = vmatprep.subr.mxu0 0.0
  %184 = vmatpush1.msra.mxu0 0.0
  %185 = vmatprep.subr.mxu0 0.0
  %186 = vmatpush1.msra.mxu0 0.0
  %187 = vmatprep.subr.mxu0 0.0
  %188 = vmatpush1.msra.mxu0 0.0
  %189 = vmatprep.subr.mxu0 0.0
  %190 = vmatpush1.msra.mxu0 0.0
  %191 = vmatprep.subr.mxu0 0.0
  %192 = vmatpush1.msra.mxu0 0.0
  %193 = vmatprep.subr.mxu0 0.0
  %194 = vmatpush1.msra.mxu0 0.0
  %195 = vmatprep.subr.mxu0 0.0
  %196 = vmatpush1.msra.mxu0 0.0
  %197 = vmatprep.mubr.f32.mxu0 0.0
  %198 = vmatmul.mubr.f32.gmra.mrb[0].mxu0 %v128
  %v199 = vpop.f32.mrb[0].mxu0
  %v200 = vadd.f32 %v124, %v199
  %v201 = vpop.f32.mrb[0].mxu0
  %202 = vmatprep.mubr.f32.mxu0 0.0
  %203 = vmatmul.mubr.f32.gmra.mrb[0].mxu0 %v131
  %v204 = vpop.f32.mrb[0].mxu0
  %v205 = vadd.f32 %v124, %v204
  %v206 = vpop.f32.mrb[0].mxu0
  %207 = vdwg.mxu0
  %v208 = vmax.f32 %v200, 0.0
  %v209 = vmax.f32 %v205, 0.0
  %vm210 = vcmask 64512
  %v211 = vsel %vm210, %v208, -inf
  %212 = vmax.xlane.f32.xlu0 %v211
  %v213 = vpop.xlane.xlu0 %212
  %v214 = vsel %vm210, %v209, -inf
  %215 = vmax.xlane.f32.xlu0 %v214
  %v216 = vpop.xlane.xlu0 %215
  %v217 = vsub.f32 %v208, %v213
  %v218 = vsub.f32 %v209, %v216
  %v219 = vmul.f32 %v217, 1.442695
  %v220 = vpow.pop %v219
  %v221 = vmul.f32 %v218, 1.442695
  %v222 = vpow.pop %v221
  %v223 = vsel %vm210, %v220, 0.0
  %224 = vadd.xlane.f32.xlu0 %v223
  %v225 = vpop.xlane.xlu0 %224
  %v226 = vsel %vm210, %v222, 0.0
  %227 = vadd.xlane.f32.xlu0 %v226
  %v228 = vpop.xlane.xlu0 %227
  %v229 = vrcp.pop %v225
  %v230 = vmul.f32 %v220, %v229
  %v231 = vrcp.pop %v228
  %v232 = vmul.f32 %v222, %v231
  %233 = vst.msk [vmem:[%s5] sm:$0xff] %vm210, %v230
  %234 = vst.msk [vmem:[%s5 + $0x8] sm:$0xff] %vm210, %v232
  // Predicated region
  $region22: #{tpu_custom_call.1} parent=0 // pred_check
    _
  $region23: #{tpu_custom_call.1} parent=0 // pred_check_branch
    %236 = sbr.rel (0) target = $region25
  $region24: #{tpu_custom_call.1} parent=0 // pred_region
    _
  $region25: #{tpu_custom_call.1} parent=0 // pred_fallthru
    _
  // Predicated region
  $region26: #{tpu_custom_call.1} parent=0 // pred_check
    _
  $region27: #{tpu_custom_call.1} parent=0 // pred_check_branch
    %238 = sbr.rel (0) target = $region29
  $region28: #{tpu_custom_call.1} parent=0 // pred_region
    _
  $region29: #{tpu_custom_call.1} parent=0 // pred_fallthru
    _

// kernel: tpu_custom_call.1
$region0: #{tpu_custom_call.1}
  #allocation0 [shape = 'u32[]', space=smem, size = 0x4, offset = 0x4, fixed_abs, tag = 'smem constant byte address 0x4 - core index']
  #allocation1 [shape = 'u32[144,128]{1,0:T(1,128)}', space=vmem, size = 0x12000, scoped, tag = 'internal scratch']
  %s0 = inlined_call_operand.vmem [shape: f32[16,32], index: 0, kind: input, shape index: {}]
  %s1 = inlined_call_operand.vmem [shape: f32[32,16], index: 1, kind: input, shape index: {}]
  %s2 = inlined_call_operand.vmem [shape: f32[1,16], index: 2, kind: input, shape index: {}]
  %s3 = inlined_call_operand.vmem [shape: f32[16,8], index: 3, kind: input, shape index: {}]
  %s4 = inlined_call_operand.vmem [shape: f32[1,8], index: 4, kind: input, shape index: {}]
  %s5 = inlined_call_operand.vmem [shape: f32[16,8], index: 5, kind: output, shape index: {}]
  %s6 = sld [smem:[#allocation0]]
  $region30: #{tpu_custom_call.1} parent=0
    _
  %s8 = ssub.s32 1, %s6
  %s9 = scalar_select 0, %s8, %s6
  // Predicated region
  $region2: #{tpu_custom_call.1} parent=0 // pred_check
    _
  $region3: #{tpu_custom_call.1} parent=0 // pred_check_branch
    %11 = sbr.rel (0) target = $region5
  $region4: #{tpu_custom_call.1} parent=0 // pred_region
    _
  $region5: #{tpu_custom_call.1} parent=0 // pred_fallthru
    _
  // Predicated region
  $region6: #{tpu_custom_call.1} parent=0 // pred_check
    _
  $region7: #{tpu_custom_call.1} parent=0 // pred_check_branch
    %13 = sbr.rel (0) target = $region9
  $region8: #{tpu_custom_call.1} parent=0 // pred_region
    _
  $region9: #{tpu_custom_call.1} parent=0 // pred_fallthru
    _
  // Predicated region
  $region10: #{tpu_custom_call.1} parent=0 // pred_check
    _
  $region11: #{tpu_custom_call.1} parent=0 // pred_check_branch
    %15 = sbr.rel (0) target = $region13
  $region12: #{tpu_custom_call.1} parent=0 // pred_region
    _
  $region13: #{tpu_custom_call.1} parent=0 // pred_fallthru
    _
  // Predicated region
  $region14: #{tpu_custom_call.1} parent=0 // pred_check
    _
  $region15: #{tpu_custom_call.1} parent=0 // pred_check_branch
    %17 = sbr.rel (0) target = $region17
  $region16: #{tpu_custom_call.1} parent=0 // pred_region
    _
  $region17: #{tpu_custom_call.1} parent=0 // pred_fallthru
    _
  // Predicated region
  $region18: #{tpu_custom_call.1} parent=0 // pred_check
    _
  $region19: #{tpu_custom_call.1} parent=0 // pred_check_branch
    %19 = sbr.rel (0) target = $region21
  $region20: #{tpu_custom_call.1} parent=0 // pred_region
    _
  $region21: #{tpu_custom_call.1} parent=0 // pred_fallthru
    _
  %v20 = vld [vmem:[%s0] sm:$0xff]
  %v21 = vld [vmem:[%s0 + $0x8] sm:$0xff]
  %v22 = vld [vmem:[%s1] sm:$0xff]
  %v23 = vld [vmem:[%s1 + $0x8] sm:$0xff]
  %v24 = vld [vmem:[%s1 + $0x10] sm:$0xff]
  %v25 = vld [vmem:[%s1 + $0x18] sm:$0xff]
  %v26 = vld [vmem:[%s2] sm:$0x1]
  %v28 = vlaneseq
  %v29 = vshrl.u32 %v28, 7
  %v30 = vsub.s32 0, %v29
  %v31 = vrot.slane %v26, %v30
  %vm33 = vcmask 261120
  %v35 = vsel %vm33, %v20, 0
  %v38 = vsel %vm33, %v21, 0
  %40 = vmatprep.subr.mxu0 0.0
  %41 = vmatpush1.msra.mxu0 %v22
  %42 = vmatprep.subr.mxu0 0.0
  %43 = vmatpush1.msra.mxu0 %v23
  %44 = vmatprep.subr.mxu0 0.0
  %45 = vmatpush1.msra.mxu0 %v24
  %46 = vmatprep.subr.mxu0 0.0
  %47 = vmatpush1.msra.mxu0 %v25
  %48 = vmatprep.subr.mxu0 0.0
  %49 = vmatpush1.msra.mxu0 0.0
  %50 = vmatprep.subr.mxu0 0.0
  %51 = vmatpush1.msra.mxu0 0.0
  %52 = vmatprep.subr.mxu0 0.0
  %53 = vmatpush1.msra.mxu0 0.0
  %54 = vmatprep.subr.mxu0 0.0
  %55 = vmatpush1.msra.mxu0 0.0
  %56 = vmatprep.subr.mxu0 0.0
  %57 = vmatpush1.msra.mxu0 0.0
  %58 = vmatprep.subr.mxu0 0.0
  %59 = vmatpush1.msra.mxu0 0.0
  %60 = vmatprep.subr.mxu0 0.0
  %61 = vmatpush1.msra.mxu0 0.0
  %62 = vmatprep.subr.mxu0 0.0
  %63 = vmatpush1.msra.mxu0 0.0
  %64 = vmatprep.subr.mxu0 0.0
  %65 = vmatpush1.msra.mxu0 0.0
  %66 = vmatprep.subr.mxu0 0.0
  %67 = vmatpush1.msra.mxu0 0.0
  %68 = vmatprep.subr.mxu0 0.0
  %69 = vmatpush1.msra.mxu0 0.0
  %70 = vmatprep.subr.mxu0 0.0
  %71 = vmatpush1.msra.mxu0 0.0
  %72 = vmatprep.subr.mxu0 0.0
  %73 = vmatpush1.msra.mxu0 0.0
  %74 = vmatprep.subr.mxu0 0.0
  %75 = vmatpush1.msra.mxu0 0.0
  %76 = vmatprep.subr.mxu0 0.0
  %77 = vmatpush1.msra.mxu0 0.0
  %78 = vmatprep.subr.mxu0 0.0
  %79 = vmatpush1.msra.mxu0 0.0
  %80 = vmatprep.subr.mxu0 0.0
  %81 = vmatpush1.msra.mxu0 0.0
  %82 = vmatprep.subr.mxu0 0.0
  %83 = vmatpush1.msra.mxu0 0.0
  %84 = vmatprep.subr.mxu0 0.0
  %85 = vmatpush1.msra.mxu0 0.0
  %86 = vmatprep.subr.mxu0 0.0
  %87 = vmatpush1.msra.mxu0 0.0
  %88 = vmatprep.subr.mxu0 0.0
  %89 = vmatpush1.msra.mxu0 0.0
  %90 = vmatprep.subr.mxu0 0.0
  %91 = vmatpush1.msra.mxu0 0.0
  %92 = vmatprep.subr.mxu0 0.0
  %93 = vmatpush1.msra.mxu0 0.0
  %94 = vmatprep.subr.mxu0 0.0
  %95 = vmatpush1.msra.mxu0 0.0
  %96 = vmatprep.subr.mxu0 0.0
  %97 = vmatpush1.msra.mxu0 0.0
  %98 = vmatprep.subr.mxu0 0.0
  %99 = vmatpush1.msra.mxu0 0.0
  %100 = vmatprep.subr.mxu0 0.0
  %101 = vmatpush1.msra.mxu0 0.0
  %102 = vmatprep.subr.mxu0 0.0
  %103 = vmatpush1.msra.mxu0 0.0
  %104 = vmatprep.mubr.f32.mxu0 0.0
  %105 = vmatmul.mubr.f32.gmra.mrb[0].mxu0 %v35
  %v106 = vpop.f32.mrb[0].mxu0
  %v107 = vadd.f32 %v31, %v106
  %v108 = vpop.f32.mrb[0].mxu0
  %109 = vmatprep.mubr.f32.mxu0 0.0
  %110 = vmatmul.mubr.f32.gmra.mrb[0].mxu0 %v38
  %v111 = vpop.f32.mrb[0].mxu0
  %v112 = vadd.f32 %v31, %v111
  %v113 = vpop.f32.mrb[0].mxu0
  %114 = vdwg.mxu0
  %v115 = vmax.f32 %v107, 0.0
  %v116 = vmax.f32 %v112, 0.0
  %v117 = vld [vmem:[%s3] sm:$0xff]
  %v118 = vld [vmem:[%s3 + $0x8] sm:$0xff]
  %v119 = vld [vmem:[%s4] sm:$0x1]
  %v121 = vlaneseq
  %v122 = vshrl.u32 %v121, 7
  %v123 = vsub.s32 0, %v122
  %v124 = vrot.slane %v119, %v123
  %vm126 = vcmask 130048
  %v128 = vsel %vm126, %v115, 0
  %v131 = vsel %vm126, %v116, 0
  %133 = vmatprep.subr.mxu0 0.0
  %134 = vmatpush1.msra.mxu0 %v117
  %135 = vmatprep.subr.mxu0 0.0
  %136 = vmatpush1.msra.mxu0 %v118
  %137 = vmatprep.subr.mxu0 0.0
  %138 = vmatpush1.msra.mxu0 0.0
  %139 = vmatprep.subr.mxu0 0.0
  %140 = vmatpush1.msra.mxu0 0.0
  %141 = vmatprep.subr.mxu0 0.0
  %142 = vmatpush1.msra.mxu0 0.0
  %143 = vmatprep.subr.mxu0 0.0
  %144 = vmatpush1.msra.mxu0 0.0
  %145 = vmatprep.subr.mxu0 0.0
  %146 = vmatpush1.msra.mxu0 0.0
  %147 = vmatprep.subr.mxu0 0.0
  %148 = vmatpush1.msra.mxu0 0.0
  %149 = vmatprep.subr.mxu0 0.0
  %150 = vmatpush1.msra.mxu0 0.0
  %151 = vmatprep.subr.mxu0 0.0
  %152 = vmatpush1.msra.mxu0 0.0
  %153 = vmatprep.subr.mxu0 0.0
  %154 = vmatpush1.msra.mxu0 0.0
  %155 = vmatprep.subr.mxu0 0.0
  %156 = vmatpush1.msra.mxu0 0.0
  %157 = vmatprep.subr.mxu0 0.0
  %158 = vmatpush1.msra.mxu0 0.0
  %159 = vmatprep.subr.mxu0 0.0
  %160 = vmatpush1.msra.mxu0 0.0
  %161 = vmatprep.subr.mxu0 0.0
  %162 = vmatpush1.msra.mxu0 0.0
  %163 = vmatprep.subr.mxu0 0.0
  %164 = vmatpush1.msra.mxu0 0.0
  %165 = vmatprep.subr.mxu0 0.0
  %166 = vmatpush1.msra.mxu0 0.0
  %167 = vmatprep.subr.mxu0 0.0
  %168 = vmatpush1.msra.mxu0 0.0
  %169 = vmatprep.subr.mxu0 0.0
  %170 = vmatpush1.msra.mxu0 0.0
  %171 = vmatprep.subr.mxu0 0.0
  %172 = vmatpush1.msra.mxu0 0.0
  %173 = vmatprep.subr.mxu0 0.0
  %174 = vmatpush1.msra.mxu0 0.0
  %175 = vmatprep.subr.mxu0 0.0
  %176 = vmatpush1.msra.mxu0 0.0
  %177 = vmatprep.subr.mxu0 0.0
  %178 = vmatpush1.msra.mxu0 0.0
  %179 = vmatprep.subr.mxu0 0.0
  %180 = vmatpush1.msra.mxu0 0.0
  %181 = vmatprep.subr.mxu0 0.0
  %182 = vmatpush1.msra.mxu0 0.0
  %183 = vmatprep.subr.mxu0 0.0
  %184 = vmatpush1.msra.mxu0 0.0
  %185 = vmatprep.subr.mxu0 0.0
  %186 = vmatpush1.msra.mxu0 0.0
  %187 = vmatprep.subr.mxu0 0.0
  %188 = vmatpush1.msra.mxu0 0.0
  %189 = vmatprep.subr.mxu0 0.0
  %190 = vmatpush1.msra.mxu0 0.0
  %191 = vmatprep.subr.mxu0 0.0
  %192 = vmatpush1.msra.mxu0 0.0
  %193 = vmatprep.subr.mxu0 0.0
  %194 = vmatpush1.msra.mxu0 0.0
  %195 = vmatprep.subr.mxu0 0.0
  %196 = vmatpush1.msra.mxu0 0.0
  %197 = vmatprep.mubr.f32.mxu0 0.0
  %198 = vmatmul.mubr.f32.gmra.mrb[0].mxu0 %v128
  %v199 = vpop.f32.mrb[0].mxu0
  %v200 = vadd.f32 %v124, %v199
  %v201 = vpop.f32.mrb[0].mxu0
  %202 = vmatprep.mubr.f32.mxu0 0.0
  %203 = vmatmul.mubr.f32.gmra.mrb[0].mxu0 %v131
  %v204 = vpop.f32.mrb[0].mxu0
  %v205 = vadd.f32 %v124, %v204
  %v206 = vpop.f32.mrb[0].mxu0
  %207 = vdwg.mxu0
  %v208 = vmax.f32 %v200, 0.0
  %v209 = vmax.f32 %v205, 0.0
  %vm210 = vcmask 64512
  %v211 = vsel %vm210, %v208, -inf
  %212 = vmax.xlane.f32.xlu0 %v211
  %v213 = vpop.xlane.xlu0 %212
  %v214 = vsel %vm210, %v209, -inf
  %215 = vmax.xlane.f32.xlu0 %v214
  %v216 = vpop.xlane.xlu0 %215
  %v217 = vsub.f32 %v208, %v213
  %v218 = vsub.f32 %v209, %v216
  %v219 = vmul.f32 %v217, 1.442695
  %v220 = vpow.pop %v219
  %v221 = vmul.f32 %v218, 1.442695
  %v222 = vpow.pop %v221
  %v223 = vsel %vm210, %v220, 0.0
  %224 = vadd.xlane.f32.xlu0 %v223
  %v225 = vpop.xlane.xlu0 %224
  %v226 = vsel %vm210, %v222, 0.0
  %227 = vadd.xlane.f32.xlu0 %v226
  %v228 = vpop.xlane.xlu0 %227
  %v229 = vrcp.pop %v225
  %v230 = vmul.f32 %v220, %v229
  %v231 = vrcp.pop %v228
  %v232 = vmul.f32 %v222, %v231
  %233 = vst.msk [vmem:[%s5] sm:$0xff] %vm210, %v230
  %234 = vst.msk [vmem:[%s5 + $0x8] sm:$0xff] %vm210, %v232
  // Predicated region
  $region22: #{tpu_custom_call.1} parent=0 // pred_check
    _
  $region23: #{tpu_custom_call.1} parent=0 // pred_check_branch
    %236 = sbr.rel (0) target = $region25
  $region24: #{tpu_custom_call.1} parent=0 // pred_region
    _
  $region25: #{tpu_custom_call.1} parent=0 // pred_fallthru
    _
  // Predicated region
  $region26: #{tpu_custom_call.1} parent=0 // pred_check
    _
  $region27: #{tpu_custom_call.1} parent=0 // pred_check_branch
    %238 = sbr.rel (0) target = $region29
  $region28: #{tpu_custom_call.1} parent=0 // pred_region
    _
  $region29: #{tpu_custom_call.1} parent=0 // pred_fallthru
    _

</llo_original>
